<compile_context>
chip_gen: v5e
topology: v5e:2x2
jax: 0.10.0
libtpu: 0.0.40
codegen_flags: <defaults>
</compile_context>

<pallas_src>
import functools

import jax
import jax.numpy as jnp
from jax.experimental import pallas as pl
from jax.experimental.pallas import tpu as pltpu


def _aspp_pooling_kernel(x_ref, w_ref, shift_ref, o_ref, acc_ref, *, hw, tile_s):
    # x_ref:     (1, C_in, T_S)   spatial tile of one image (native dtype)
    # w_ref:     (C_in, C_out)    conv weight, pre-transposed, BN-scale and
    #                             1/(H*W) already folded in (f32)
    # shift_ref: (1, C_out)       folded BN shift = beta - mean * scale (f32)
    # o_ref:     (1, 1, C_out)    pooled + conv + BN + ReLU result
    # acc_ref:   (1, C_in) f32    running spatial sum accumulator (scratch)
    k = pl.program_id(1)

    @pl.when(k == 0)
    def _():
        acc_ref[...] = jnp.zeros_like(acc_ref)

    x = x_ref[...]                                           # (1, C_in, T_S)
    if hw % tile_s != 0:
        # Mask out-of-range spatial positions of the (padded) last tile.
        valid = hw - k * tile_s
        lane = jax.lax.broadcasted_iota(jnp.int32, x.shape, dimension=2)
        x = jnp.where(lane < valid, x, jnp.zeros_like(x))

    # Partial spatial sum, accumulated in f32 (no whole-block astype).
    acc_ref[...] += jnp.sum(x, axis=-1, dtype=jnp.float32)   # (1, C_in)

    @pl.when(k == pl.num_programs(1) - 1)
    def _():
        # mean-pool divisor and BN scale are folded into w_ref already.
        y = jnp.dot(acc_ref[...], w_ref[...],
                    preferred_element_type=jnp.float32)      # (1, C_out)
        y = y + shift_ref[...]
        y = jnp.maximum(y, 0.0)
        o_ref[...] = y.reshape(o_ref.shape).astype(o_ref.dtype)


def _pick_spatial_tile(hw, c_in, itemsize, vmem_budget_bytes=16 * 1024 * 1024):
    """Largest spatial tile whose double-buffered input stays under budget."""
    max_s = max(128, vmem_budget_bytes // (2 * max(c_in, 1) * itemsize))
    if hw <= max_s:
        return hw                       # full spatial extent (always legal)
    return max(128, (max_s // 128) * 128)


def aspp_pooling(x, conv_w, bn_gamma, bn_beta, bn_mean, bn_var,
                 out_hw=(60, 60), eps=1e-5, spatial_tile=None):
    """x: (N, C_in, H, W) NCHW. conv_w: (C_out, C_in, 1, 1). Returns NCHW."""
    N, C_in, H, W = x.shape
    C_out = conv_w.shape[0]
    H_out, W_out = out_hw
    hw = H * W

    x_flat = x.reshape(N, C_in, hw)

    # Fold BN (inference) and the 1/(H*W) mean divisor into the conv weight;
    # pre-transpose to (C_in, C_out) so the kernel contracts without a
    # relayout of the weight tile.
    w2d = conv_w.reshape(C_out, C_in).astype(jnp.float32)
    scale = bn_gamma.astype(jnp.float32) / jnp.sqrt(bn_var.astype(jnp.float32) + eps)
    shift = (bn_beta.astype(jnp.float32)
             - bn_mean.astype(jnp.float32) * scale).reshape(1, C_out)
    w_t = (w2d * scale[:, None] / float(hw)).T                # (C_in, C_out)

    if spatial_tile is None:
        tile_s = _pick_spatial_tile(hw, C_in, x.dtype.itemsize)
    else:
        tile_s = min(spatial_tile, hw)
    n_k = pl.cdiv(hw, tile_s)

    # Explicit (conservative) VMEM limit: double-buffered input tile + weights
    # with headroom; safe on v5e/v6e (128 MiB) and v7x (64 MiB).
    in_tile_bytes = 2 * C_in * tile_s * x.dtype.itemsize
    aux_bytes = (C_in * C_out + 3 * C_out + C_in) * 4
    vmem_limit = int(min(48 * 2**20, max(8 * 2**20, 4 * (in_tile_bytes + aux_bytes))))

    cost = pl.CostEstimate(
        flops=N * C_in * hw + 2 * N * C_in * C_out,
        transcendentals=0,
        bytes_accessed=(x_flat.size * x.dtype.itemsize
                        + w_t.size * 4 + shift.size * 4
                        + N * C_out * x.dtype.itemsize),
    )

    kernel = functools.partial(_aspp_pooling_kernel, hw=hw, tile_s=tile_s)

    pooled = pl.pallas_call(
        kernel,
        out_shape=jax.ShapeDtypeStruct((N, 1, C_out), x.dtype),
        grid_spec=pltpu.PrefetchScalarGridSpec(
            num_scalar_prefetch=0,
            grid=(N, n_k),
            in_specs=[
                pl.BlockSpec((1, C_in, tile_s), lambda b, k: (b, 0, k)),
                pl.BlockSpec((C_in, C_out), lambda b, k: (0, 0)),
                pl.BlockSpec((1, C_out), lambda b, k: (0, 0)),
            ],
            out_specs=pl.BlockSpec((1, 1, C_out), lambda b, k: (b, 0, 0)),
            scratch_shapes=[pltpu.VMEM((1, C_in), jnp.float32)],
        ),
        compiler_params=pltpu.CompilerParams(
            dimension_semantics=("parallel", "arbitrary"),
            vmem_limit_bytes=vmem_limit,
        ),
        cost_estimate=cost,
    )(x_flat, w_t, shift)

    # 1x1 -> (H_out, W_out) bilinear upsample with align_corners=True is a
    # broadcast; done outside the kernel (pure layout plumbing, fusible by XLA).
    y = pooled.reshape(N, C_out)
    return jnp.broadcast_to(y[:, :, None, None], (N, C_out, H_out, W_out))


def _reference(x, conv_w, bn_gamma, bn_beta, bn_mean, bn_var,
               out_hw=(60, 60), eps=1e-5):
    N, C_in, H, W = x.shape
    C_out = conv_w.shape[0]
    pooled = jnp.mean(x, axis=(2, 3))                               # (N, C_in)
    y = pooled @ conv_w.reshape(C_out, C_in).T                      # (N, C_out)
    y = (y - bn_mean) / jnp.sqrt(bn_var + eps) * bn_gamma + bn_beta
    y = jnp.maximum(y, 0.0)
    return jnp.broadcast_to(y[:, :, None, None],
                            (N, C_out, out_hw[0], out_hw[1]))


if __name__ == "__main__":
    key = jax.random.PRNGKey(0)
    k_x, k_w, k_g, k_b, k_m, k_v = jax.random.split(key, 6)

    N, C_in, H, W = 2, 4, 16, 16
    C_out = 8
    H_out, W_out = 60, 60

    x = jax.random.normal(k_x, (N, C_in, H, W), dtype=jnp.float32)
    conv_w = jax.random.normal(k_w, (C_out, C_in, 1, 1), dtype=jnp.float32) * 0.1
    bn_gamma = 1.0 + 0.1 * jax.random.normal(k_g, (C_out,), dtype=jnp.float32)
    bn_beta = 0.1 * jax.random.normal(k_b, (C_out,), dtype=jnp.float32)
    bn_mean = 0.05 * jax.random.normal(k_m, (C_out,), dtype=jnp.float32)
    bn_var = jnp.abs(1.0 + 0.1 * jax.random.normal(k_v, (C_out,), dtype=jnp.float32))

    # spatial_tile=128 exercises the multi-step tiled reduction path (H*W=256).
    out = aspp_pooling(x, conv_w, bn_gamma, bn_beta, bn_mean, bn_var,
                       out_hw=(H_out, W_out), spatial_tile=128)
    out = jax.block_until_ready(out)

    ref = _reference(x, conv_w, bn_gamma, bn_beta, bn_mean, bn_var,
                     out_hw=(H_out, W_out))
    assert out.shape == (N, C_out, H_out, W_out)
    assert jnp.allclose(out, ref, atol=1e-5, rtol=1e-5)
    print("KERNEL_OK")
</pallas_src>

<mosaic_0001>
module attributes {stable_mosaic.version = 11 : i64} {
  func.func @_aspp_pooling_kernel(%arg0: i32, %arg1: i32, %arg2: memref<1x4x128xf32, #tpu.memory_space<vmem>>, %arg3: memref<4x8xf32, #tpu.memory_space<vmem>>, %arg4: memref<1x8xf32, #tpu.memory_space<vmem>>, %arg5: memref<1x1x8xf32, #tpu.memory_space<vmem>>, %arg6: memref<1x4xf32, #tpu.memory_space<vmem>>) attributes {dimension_semantics = [#tpu.dimension_semantics<parallel>, #tpu.dimension_semantics<arbitrary>], iteration_bounds = array<i64: 2, 2>, scalar_prefetch = 0 : i64, scratch_operands = 1 : i64, tpu.core_type = #tpu.core_type<tc>, window_params = [{transform_indices = @transform_0, window_bounds = array<i64: 1, 4, 128>}, {pipeline_mode = #tpu.pipeline_mode<synchronous>, transform_indices = @transform_1, window_bounds = array<i64: 4, 8>}, {pipeline_mode = #tpu.pipeline_mode<synchronous>, transform_indices = @transform_2, window_bounds = array<i64: 1, 8>}, {transform_indices = @transform_3, window_bounds = array<i64: 1, 1, 8>}]} {
    %c0_i32 = arith.constant 0 : i32
    %0 = arith.cmpi eq, %arg1, %c0_i32 : i32
    %1 = arith.extui %0 : i1 to i32
    %c0_i32_0 = arith.constant 0 : i32
    %2 = arith.cmpi ne, %1, %c0_i32_0 : i32
    scf.if %2 {
      %cst_8 = arith.constant 0.000000e+00 : f32
      %11 = vector.broadcast %cst_8 : f32 to vector<1x4xf32>
      %c0_9 = arith.constant 0 : index
      %c0_10 = arith.constant 0 : index
      %12 = vector.load %arg6[%c0_9, %c0_10] : memref<1x4xf32, #tpu.memory_space<vmem>>, vector<1x4xf32>
      tpu.vector_store %arg6[%c0_9, %c0_10], %11 {strides = array<i32>} : memref<1x4xf32, #tpu.memory_space<vmem>>, vector<1x4xf32>,
    } else {
    }
    %c0 = arith.constant 0 : index
    %c0_1 = arith.constant 0 : index
    %c0_2 = arith.constant 0 : index
    %3 = vector.load %arg2[%c0, %c0_1, %c0_2] : memref<1x4x128xf32, #tpu.memory_space<vmem>>, vector<1x4x128xf32>
    %c0_3 = arith.constant 0 : index
    %c0_4 = arith.constant 0 : index
    %4 = vector.load %arg6[%c0_3, %c0_4] : memref<1x4xf32, #tpu.memory_space<vmem>>, vector<1x4xf32>
    %cst = arith.constant dense<0.000000e+00> : vector<1x4xf32>
    %5 = vector.multi_reduction <add>, %3, %cst [2] : vector<1x4x128xf32> to vector<1x4xf32>
    %6 = arith.addf %4, %5 : vector<1x4xf32>
    %c0_5 = arith.constant 0 : index
    %c0_6 = arith.constant 0 : index
    %7 = vector.load %arg6[%c0_5, %c0_6] : memref<1x4xf32, #tpu.memory_space<vmem>>, vector<1x4xf32>
    tpu.vector_store %arg6[%c0_5, %c0_6], %6 {strides = array<i32>} : memref<1x4xf32, #tpu.memory_space<vmem>>, vector<1x4xf32>,
    %c1_i32 = arith.constant 1 : i32
    %8 = arith.cmpi eq, %arg1, %c1_i32 : i32
    %9 = arith.extui %8 : i1 to i32
    %c0_i32_7 = arith.constant 0 : i32
    %10 = arith.cmpi ne, %9, %c0_i32_7 : i32
    scf.if %10 {
      %c0_8 = arith.constant 0 : index
      %c0_9 = arith.constant 0 : index
      %11 = vector.load %arg6[%c0_8, %c0_9] : memref<1x4xf32, #tpu.memory_space<vmem>>, vector<1x4xf32>
      %c0_10 = arith.constant 0 : index
      %c0_11 = arith.constant 0 : index
      %12 = vector.load %arg3[%c0_10, %c0_11] : memref<4x8xf32, #tpu.memory_space<vmem>>, vector<4x8xf32>
      %cst_12 = arith.constant dense<0.000000e+00> : vector<1x8xf32>
      %13 = tpu.matmul %11, %12, %cst_12 {dimension_numbers = #tpu.dot_dimension_numbers<[1], [0], [0], [1], [0, 0, 1, 1], [], []>} : vector<1x4xf32>, vector<4x8xf32>, vector<1x8xf32> -> vector<1x8xf32>
      %c0_13 = arith.constant 0 : index
      %c0_14 = arith.constant 0 : index
      %14 = vector.load %arg4[%c0_13, %c0_14] : memref<1x8xf32, #tpu.memory_space<vmem>>, vector<1x8xf32>
      %15 = arith.addf %13, %14 : vector<1x8xf32>
      %cst_15 = arith.constant 0.000000e+00 : f32
      %16 = vector.broadcast %cst_15 : f32 to vector<1x8xf32>
      %17 = arith.maximumf %15, %16 : vector<1x8xf32>
      %18 = vector.shape_cast %17 : vector<1x8xf32> to vector<1x1x8xf32>
      %c0_16 = arith.constant 0 : index
      %c0_17 = arith.constant 0 : index
      %c0_18 = arith.constant 0 : index
      %19 = vector.load %arg5[%c0_16, %c0_17, %c0_18] : memref<1x1x8xf32, #tpu.memory_space<vmem>>, vector<1x1x8xf32>
      tpu.vector_store %arg5[%c0_16, %c0_17, %c0_18], %18 {strides = array<i32>} : memref<1x1x8xf32, #tpu.memory_space<vmem>>, vector<1x1x8xf32>,
    } else {
    }
    return
  }
  func.func @transform_0(%arg0: i32, %arg1: i32) -> (i32, i32, i32) {
    %c0_i32 = arith.constant 0 : i32
    %c0_i32_0 = arith.constant 0 : i32
    return %arg0, %c0_i32, %arg1 : i32, i32, i32
  }
  func.func @transform_1(%arg0: i32, %arg1: i32) -> (i32, i32) {
    %c0_i32 = arith.constant 0 : i32
    %c0_i32_0 = arith.constant 0 : i32
    %c0_i32_1 = arith.constant 0 : i32
    return %c0_i32, %c0_i32_0 : i32, i32
  }
  func.func @transform_2(%arg0: i32, %arg1: i32) -> (i32, i32) {
    %c0_i32 = arith.constant 0 : i32
    %c0_i32_0 = arith.constant 0 : i32
    %c0_i32_1 = arith.constant 0 : i32
    return %c0_i32, %c0_i32_0 : i32, i32
  }
  func.func @transform_3(%arg0: i32, %arg1: i32) -> (i32, i32, i32) {
    %c0_i32 = arith.constant 0 : i32
    %c0_i32_0 = arith.constant 0 : i32
    %c0_i32_1 = arith.constant 0 : i32
    return %arg0, %c0_i32, %c0_i32_0 : i32, i32, i32
  }
}

</mosaic_0001>

<llo_original>
// kernel: tpu_custom_call.1
$region0: #{tpu_custom_call.1}
  #allocation0 [shape = 'u32[]', space=smem, size = 0x4, offset = 0x4, fixed_abs, tag = 'smem constant byte address 0x4 - core index']
  #allocation1 [shape = 'u32[72,128]{1,0:T(1,128)}', space=vmem, size = 0x9000, scoped, tag = 'internal scratch']
  #allocation2 [shape = 'f32[1,4]{1,0:T(1,128)}', space=vmem, size = 0x200, scoped, tag = 'scratch operand']
  %s0 = inlined_call_operand.hbm [shape: f32[2,4,256], index: 0, kind: input, shape index: {}]
  %s1 = inlined_call_operand.hbm [shape: f32[4,8], index: 1, kind: input, shape index: {}]
  %s2 = inlined_call_operand.vmem [shape: f32[1,8], index: 2, kind: input, shape index: {}]
  %s3 = inlined_call_operand.hbm [shape: f32[2,1,8], index: 3, kind: output, shape index: {}]
  %s4 = sld [smem:[#allocation0]]
  $region61: #{tpu_custom_call.1} parent=0
    _
  %s6 = ssub.s32 1, %s4
  %s7 = scalar_select 0, %s6, %s4
  $region1: #{tpu_custom_call.1} parent=0
    #allocation3 [shape = 'u8[4096]{0}', space=vmem, size = 0x1000, scoped, tag = 'input window, operand 0']
    #allocation4 [shape = 's32[2]{0}', space=sflag, size = 0x8, scoped, tag = 'scoped memory for tpu_custom_call.1']
    #allocation5 [shape = 's32[2]{0}', space=sflag, size = 0x8, scoped, tag = 'scoped memory for tpu_custom_call.1']
    #allocation6 [shape = 'u8[2048]{0}', space=vmem, size = 0x800, scoped, tag = 'input window, operand 1, single buffered']
    #allocation7 [shape = 's32[1]{0}', space=sflag, size = 0x4, scoped, tag = 'scoped memory for tpu_custom_call.1']
    #allocation8 [shape = 'u8[1024]{0}', space=vmem, size = 0x400, scoped, tag = 'output window, operand 0']
    %8 = vsyncpa [#allocation4], 0
    %s9 = scalar_lea.sflag [#allocation4], 1
    %10 = vsyncpa %s9, 0
    %11 = vsyncpa [#allocation7], 0
    %12 = vsyncpa [#allocation5], 0
    %s13 = scalar_lea.sflag [#allocation5], 1
    %14 = vsyncpa %s13, 0
    loop: start=0, step=1, limit=6
    $region2: #{tpu_custom_call.1} parent=1 // loop_pre_header
      _
    $region3: #{tpu_custom_call.1} parent=1 // loop_header
      %s16 = sphi 0, %s20
      %p17 = scmp.ge.s32.totalorder %s16, 6
      %s23 = sphi 0, %s35
      %s24 = sphi 0, %s31
      %s25 = sphi 0, %s23
      %s26 = sphi 0, %s24
      %s27 = sphi 0, %s25
      %s28 = sphi 0, %s26
      %s40 = sphi 0, %s42
      %s43 = sphi 0, %s40
      %s44 = sphi 0, %s43
      %s60 = sphi 0, %s44
      %s64 = sphi 0, %s64
      %s66 = sphi 0, %s64
      %s67 = sphi 0, %s66
      %s81 = sphi 0, %s67
      %s85 = sphi 0, %s85
      %s87 = sphi 0, %s85
      %s88 = sphi 0, %s87
      %s102 = sphi 0, %s88
      %s108 = sphi 0, %s110
      %s111 = sphi 0, %s108
      %s112 = sphi 0, %s111
      %s128 = sphi 0, %s112
    $region4: #{tpu_custom_call.1} parent=1 // loop_header_branch
      %19 = sbr.rel (%p17) target = $region8
    $region5: #{tpu_custom_call.1} parent=1 // loop_body
      %s21 = ssub.s32 %s16, 1
      %s22 = ssub.s32 %s16, 2
      %s29 = sadd.s32 1, %s24
      %p30 = scmp.ge.s32.totalorder %s29, 2
      %s31 = scalar_select %p30, 0, %s29
      %s32 = sadd.s32 1, %s23
      %s33 = scalar_select %p30, %s32, %s23
      %p34 = scmp.ge.s32.totalorder %s33, 2
      %s35 = scalar_select %p34, 0, %s33
      %s36 = ssub.s32 %s23, %s35
      %s37 = ssub.s32 %s24, %s31
      %s38 = sor.u32 %s36, %s37
      %p39 = scmp.eq.s32.totalorder %s38, 0
      %s41 = sadd.s32 %s40, 1
      %s42 = scalar_select %p39, %s40, %s41
      %p45 = pneg %p39
      %p46 = scmp.eq.s32.totalorder %s16, 3
      %p47 = por %p45, %p46
      %p48 = scmp.ne.s32.totalorder %s40, %s43
      %p49 = scmp.eq.s32.totalorder %s16, 0
      %p50 = por %p48, %p49
      %p51 = scmp.ne.s32.totalorder %s40, %s43
      %p52 = scmp.eq.s32.totalorder %s21, 3
      %p53 = por %p51, %p52
      %p54 = scmp.ne.s32.totalorder %s43, %s44
      %p55 = scmp.eq.s32.totalorder %s21, 0
      %p56 = por %p54, %p55
      %p57 = scmp.ne.s32.totalorder %s43, %s44
      %p58 = scmp.eq.s32.totalorder %s22, 3
      %p59 = por %p57, %p58
      %p61 = scmp.ne.s32.totalorder %s44, %s60
      %p62 = scmp.eq.s32.totalorder %s22, 0
      %p63 = por %p61, %p62
      %s65 = sadd.s32 %s64, 1
      %p68 = scmp.eq.s32.totalorder %s16, 3
      %p69 = scmp.ne.s32.totalorder %s64, %s66
      %p70 = scmp.eq.s32.totalorder %s16, 0
      %p71 = por %p69, %p70
      %p72 = scmp.ne.s32.totalorder %s64, %s66
      %p73 = scmp.eq.s32.totalorder %s21, 3
      %p74 = por %p72, %p73
      %p75 = scmp.ne.s32.totalorder %s66, %s67
      %p76 = scmp.eq.s32.totalorder %s21, 0
      %p77 = por %p75, %p76
      %p78 = scmp.ne.s32.totalorder %s66, %s67
      %p79 = scmp.eq.s32.totalorder %s22, 3
      %p80 = por %p78, %p79
      %p82 = scmp.ne.s32.totalorder %s67, %s81
      %p83 = scmp.eq.s32.totalorder %s22, 0
      %p84 = por %p82, %p83
      %s86 = sadd.s32 %s85, 1
      %p89 = scmp.eq.s32.totalorder %s16, 3
      %p90 = scmp.ne.s32.totalorder %s85, %s87
      %p91 = scmp.eq.s32.totalorder %s16, 0
      %p92 = por %p90, %p91
      %p93 = scmp.ne.s32.totalorder %s85, %s87
      %p94 = scmp.eq.s32.totalorder %s21, 3
      %p95 = por %p93, %p94
      %p96 = scmp.ne.s32.totalorder %s87, %s88
      %p97 = scmp.eq.s32.totalorder %s21, 0
      %p98 = por %p96, %p97
      %p99 = scmp.ne.s32.totalorder %s87, %s88
      %p100 = scmp.eq.s32.totalorder %s22, 3
      %p101 = por %p99, %p100
      %p103 = scmp.ne.s32.totalorder %s88, %s102
      %p104 = scmp.eq.s32.totalorder %s22, 0
      %p105 = por %p103, %p104
      %s106 = ssub.s32 %s23, %s35
      %p107 = scmp.eq.s32.totalorder %s106, 0
      %s109 = sadd.s32 %s108, 1
      %s110 = scalar_select %p107, %s108, %s109
      %p113 = pneg %p107
      %p114 = scmp.eq.s32.totalorder %s16, 3
      %p115 = por %p113, %p114
      %p116 = scmp.ne.s32.totalorder %s108, %s111
      %p117 = scmp.eq.s32.totalorder %s16, 0
      %p118 = por %p116, %p117
      %p119 = scmp.ne.s32.totalorder %s108, %s111
      %p120 = scmp.eq.s32.totalorder %s21, 3
      %p121 = por %p119, %p120
      %p122 = scmp.ne.s32.totalorder %s111, %s112
      %p123 = scmp.eq.s32.totalorder %s21, 0
      %p124 = por %p122, %p123
      %p125 = scmp.ne.s32.totalorder %s111, %s112
      %p126 = scmp.eq.s32.totalorder %s22, 3
      %p127 = por %p125, %p126
      %p129 = scmp.ne.s32.totalorder %s112, %s128
      %p130 = scmp.eq.s32.totalorder %s22, 0
      %p131 = por %p129, %p130
      %p132 = scmp.le.s32.totalorder 1, %s16
      %p133 = scmp.lt.s32.totalorder %s16, 5
      %p134 = pnand %p132, %p133
      %p135 = pneg %p134
      // Predicated region
      $region9: #{tpu_custom_call.1} parent=5 // pred_check
        _
      $region10: #{tpu_custom_call.1} parent=5 // pred_check_branch
        %137 = sbr.rel (%p134) target = $region12
      $region11: #{tpu_custom_call.1} parent=5 // pred_region
        %s138 = ssub.s32 %s16, 1
        // Predicated region
        $region13: #{tpu_custom_call.1} parent=11 // pred_check
          %p139 = pneg %p77
        $region14: #{tpu_custom_call.1} parent=11 // pred_check_branch
          %141 = sbr.rel (%p139) target = $region16
        $region15: #{tpu_custom_call.1} parent=11 // pred_region
          %143 = vsyncadd [#allocation7], 0
          %s145 = sshll.u32 %s1, 4
          %s146 = int_to_ptr.hbm [resolvable:$true] %s145
          %s147 = sshll.u32 [#allocation6], 4
          %s148 = int_to_ptr.vmem [resolvable:$true] %s147
          %150 = dma.hbm_to_vmem [thread:$0]  %s146, 64, %s148, [#allocation7]
        $region16: #{tpu_custom_call.1} parent=11 // pred_fallthru
          _
        // Predicated region
        $region17: #{tpu_custom_call.1} parent=11 // pred_check
          %p151 = pneg %p98
        $region18: #{tpu_custom_call.1} parent=11 // pred_check_branch
          %153 = sbr.rel (%p151) target = $region20
        $region19: #{tpu_custom_call.1} parent=11 // pred_region
          _
        $region20: #{tpu_custom_call.1} parent=11 // pred_fallthru
          _
      $region12: #{tpu_custom_call.1} parent=5 // pred_fallthru
        _
      %p154 = scmp.lt.s32.totalorder %s16, 4
      // Predicated region
      $region21: #{tpu_custom_call.1} parent=5 // pred_check
        %p155 = pneg %p154
      $region22: #{tpu_custom_call.1} parent=5 // pred_check_branch
        %157 = sbr.rel (%p155) target = $region24
      $region23: #{tpu_custom_call.1} parent=5 // pred_region
        // Predicated region
        $region25: #{tpu_custom_call.1} parent=23 // pred_check
          %p158 = pneg %p50
        $region26: #{tpu_custom_call.1} parent=23 // pred_check_branch
          %160 = sbr.rel (%p158) target = $region28
        $region27: #{tpu_custom_call.1} parent=23 // pred_region
          %s161 = sand.u32 %s40, 1
          %s162 = scalar_lea.sflag [#allocation4], %s161
          %s163 = sand.u32 %s40, 1
          %s164 = smul.addr %s163, 4
          %s165 = scalar_lea.vmem [#allocation3], %s164
          %167 = vsyncadd %s162, 0
          %s168 = smul.addr %s23, 2
          %s169 = sadd.s32 %s24, %s168
          %s170 = smul.addr %s169, 4
          %s171 = scalar_lea.hbm %s0, %s170
          %s173 = sshll.u32 %s171, 4
          %s174 = int_to_ptr.hbm [resolvable:$true] %s173
          %s175 = sshll.u32 %s165, 4
          %s176 = int_to_ptr.vmem [resolvable:$true] %s175
          %178 = dma.hbm_to_vmem [thread:$0]  %s174, 64, %s176, %s162
        $region28: #{tpu_custom_call.1} parent=23 // pred_fallthru
          _
      $region24: #{tpu_custom_call.1} parent=5 // pred_fallthru
        _
      %p179 = scmp.le.s32.totalorder 1, %s16
      %p180 = scmp.lt.s32.totalorder %s16, 5
      %p181 = pnand %p179, %p180
      %p182 = pneg %p181
      // Predicated region
      $region29: #{tpu_custom_call.1} parent=5 // pred_check
        _
      $region30: #{tpu_custom_call.1} parent=5 // pred_check_branch
        %184 = sbr.rel (%p181) target = $region32
      $region31: #{tpu_custom_call.1} parent=5 // pred_region
        %s185 = ssub.s32 %s16, 1
        %s186 = sand.u32 %s43, 1
        %s187 = scalar_lea.sflag [#allocation4], %s186
        %s188 = sand.u32 %s43, 1
        %s189 = smul.addr %s188, 4
        %s190 = scalar_lea.vmem [#allocation3], %s189
        // Predicated region
        $region33: #{tpu_custom_call.1} parent=31 // pred_check
          %p191 = pneg %p56
        $region34: #{tpu_custom_call.1} parent=31 // pred_check_branch
          %193 = sbr.rel (%p191) target = $region36
        $region35: #{tpu_custom_call.1} parent=31 // pred_region
          %195 = dma.done %s187, 64
        $region36: #{tpu_custom_call.1} parent=31 // pred_fallthru
          _
        // Predicated region
        $region37: #{tpu_custom_call.1} parent=31 // pred_check
          %p196 = pneg %p77
        $region38: #{tpu_custom_call.1} parent=31 // pred_check_branch
          %198 = sbr.rel (%p196) target = $region40
        $region39: #{tpu_custom_call.1} parent=31 // pred_region
          %200 = dma.done [#allocation7], 64
        $region40: #{tpu_custom_call.1} parent=31 // pred_fallthru
          _
        %s201 = sand.u32 %s43, 1
        %s202 = scalar_lea.sflag [#allocation4], %s201
        %s203 = sand.u32 %s43, 1
        %s204 = smul.addr %s203, 4
        %s205 = scalar_lea.vmem [#allocation3], %s204
        %p206 = pneg %p56
        %p207 = pneg %p53
        %p208 = pneg %p77
        %p209 = pneg %p74
        %p210 = pneg %p98
        %p211 = pneg %p95
        %p212 = pneg %p124
        %p213 = pneg %p121
        %s214 = sand.u32 %s111, 1
        %s215 = scalar_lea.sflag [#allocation5], %s214
        %s216 = sand.u32 %s111, 1
        %s217 = scalar_lea.vmem [#allocation8], %s216
        %p218 = scmp.eq.s32.totalorder %s26, 0
        // Predicated region
        $region41: #{tpu_custom_call.1} parent=31 // pred_check
          %p219 = pneg %p218
        $region42: #{tpu_custom_call.1} parent=31 // pred_check_branch
          %221 = sbr.rel (%p219) target = $region44
        $region43: #{tpu_custom_call.1} parent=31 // pred_region
          %vm222 = vcmask 24576
          %223 = vst.msk [vmem:[#allocation2] sm:$0x1] %vm222, 0.0
        $region44: #{tpu_custom_call.1} parent=31 // pred_fallthru
          _
        %v224 = vld [vmem:[%s190] sm:$0xf]
        %v225 = vld [vmem:[#allocation2] sm:$0x1]
        %vm226 = vcmask 1043456
        %v227 = vsel %vm226, %v224, 0.0
        %228 = vadd.xlane.f32.xlu0 %v227
        %v229 = vpop.xlane.xlu0 %228
        %v231 = vperm.slane %v229, 0
        %v232 = vperm.slane %v229, 1
        %v233 = vperm.slane %v229, 2
        %v234 = vperm.slane %v229, 3
        %235 = vst [vmem:[#allocation1] ss:$9 sm:$0xff] %v231
        %s236 = scalar_lea.vmem [#allocation1], 1
        %237 = vst [vmem:[%s236] ss:$9 sm:$0xff] %v232
        %s238 = scalar_lea.vmem [#allocation1], 2
        %239 = vst [vmem:[%s238] ss:$9 sm:$0xff] %v233
        %s240 = scalar_lea.vmem [#allocation1], 3
        %241 = vst [vmem:[%s240] ss:$9 sm:$0xff] %v234
        %v242 = vld [vmem:[#allocation1] sm:$0xff]
        %243 = vset.pattern.permute.xlu0 0
        %244 = vperm.xlu0 %243, %v242
        %v245 = vpop.permute.xlu0 %244
        %v246 = vlaneseq
        %v247 = vand.u32 %v246, 127
        %v248 = vperm.slane %v245, %v247
        %v250 = vadd.f32 %v225, %v248
        %vm251 = vcmask 24576
        %252 = vst.msk [vmem:[#allocation2] sm:$0x1] %vm251, %v250
        %p253 = scmp.eq.s32.totalorder %s26, 1
        // Predicated region
        $region45: #{tpu_custom_call.1} parent=31 // pred_check
          %p254 = pneg %p253
        $region46: #{tpu_custom_call.1} parent=31 // pred_check_branch
          %256 = sbr.rel (%p254) target = $region48
        $region47: #{tpu_custom_call.1} parent=31 // pred_region
          %v257 = vld [vmem:[#allocation2] sm:$0x1]
          %v258 = vld [vmem:[#allocation6] sm:$0xf]
          %v259 = vld [vmem:[%s2] sm:$0x1]
          %vm260 = vcmask 31744
          %v262 = vsel %vm260, %v257, 0
          %v265 = vsel %vm226, %v258, 0
          %267 = vmatpush.msra.mxu0 0.0
          %268 = vmatpush.msra.mxu0 0.0
          %269 = vmatpush.msra.mxu0 0.0
          %270 = vmatpush.msra.mxu0 0.0
          %271 = vmatpush.msra.mxu0 0.0
          %272 = vmatpush.msra.mxu0 0.0
          %273 = vmatpush.msra.mxu0 0.0
          %274 = vmatpush.msra.mxu0 0.0
          %275 = vmatpush.msra.mxu0 0.0
          %276 = vmatpush.msra.mxu0 0.0
          %277 = vmatpush.msra.mxu0 0.0
          %278 = vmatpush.msra.mxu0 0.0
          %279 = vmatpush.msra.mxu0 0.0
          %280 = vmatpush.msra.mxu0 0.0
          %281 = vmatpush.msra.mxu0 0.0
          %282 = vmatpush.msra.mxu0 %v265
          %283 = vmatmul.f32.gmra.mxu0 %v262
          %v284 = vpop.f32.mrf.mxu0
          %v285 = vadd.f32 %v259, %v284
          %286 = vdwg.mxu0
          %v287 = vmax.f32 %v285, 0.0
          %vm288 = vcmask 57344
          %289 = vst.msk [vmem:[%s217] sm:$0x1] %vm288, %v287
        $region48: #{tpu_custom_call.1} parent=31 // pred_fallthru
          _
        %s290 = sand.u32 %s111, 1
        %s291 = scalar_lea.sflag [#allocation5], %s290
        %s292 = sand.u32 %s111, 1
        %s293 = scalar_lea.vmem [#allocation8], %s292
        // Predicated region
        $region49: #{tpu_custom_call.1} parent=31 // pred_check
          %p294 = pneg %p121
        $region50: #{tpu_custom_call.1} parent=31 // pred_check_branch
          %296 = sbr.rel (%p294) target = $region52
        $region51: #{tpu_custom_call.1} parent=31 // pred_region
          %298 = vsyncadd %s291, 0
          %s299 = scalar_lea.hbm %s3, %s25
          %s301 = sshll.u32 %s293, 4
          %s302 = int_to_ptr.vmem [resolvable:$true] %s301
          %s303 = sshll.u32 %s299, 4
          %s304 = int_to_ptr.hbm [resolvable:$true] %s303
          %306 = dma.vmem_to_hbm [thread:$0]  %s302, 16, %s304, %s291
        $region52: #{tpu_custom_call.1} parent=31 // pred_fallthru
          _
      $region32: #{tpu_custom_call.1} parent=5 // pred_fallthru
        _
      %p307 = scmp.le.s32.totalorder 2, %s16
      // Predicated region
      $region53: #{tpu_custom_call.1} parent=5 // pred_check
        %p308 = pneg %p307
      $region54: #{tpu_custom_call.1} parent=5 // pred_check_branch
        %310 = sbr.rel (%p308) target = $region56
      $region55: #{tpu_custom_call.1} parent=5 // pred_region
        %s311 = ssub.s32 %s16, 2
        // Predicated region
        $region57: #{tpu_custom_call.1} parent=55 // pred_check
          %p312 = pneg %p127
        $region58: #{tpu_custom_call.1} parent=55 // pred_check_branch
          %314 = sbr.rel (%p312) target = $region60
        $region59: #{tpu_custom_call.1} parent=55 // pred_region
          %s315 = sand.u32 %s112, 1
          %s316 = scalar_lea.sflag [#allocation5], %s315
          %s317 = sand.u32 %s112, 1
          %s318 = scalar_lea.vmem [#allocation8], %s317
          %320 = dma.done %s316, 16
        $region60: #{tpu_custom_call.1} parent=55 // pred_fallthru
          _
      $region56: #{tpu_custom_call.1} parent=5 // pred_fallthru
        _
    $region6: #{tpu_custom_call.1} parent=1 // loop_footer
      %s20 = sadd.s32 1, %s16
    $region7: #{tpu_custom_call.1} parent=1 // loop_footer_branch
      %15 = sbr.rel target = $region3
    $region8: #{tpu_custom_call.1} parent=1 // loop_exit
      _
    %321 = vsyncpa [#allocation4], 1
    %s322 = scalar_lea.sflag [#allocation4], 1
    %323 = vsyncpa %s322, 1
    %324 = vsyncpa [#allocation7], 1
    %325 = vsyncpa [#allocation5], 1
    %s326 = scalar_lea.sflag [#allocation5], 1
    %327 = vsyncpa %s326, 1

</llo_original>
